<compile_context>
chip_gen: v7x
topology: tpu7x:2x2x1
jax: 0.10.0
libtpu: 0.0.40
codegen_flags: <defaults>
</compile_context>

<pallas_src>
import math
from functools import partial

import jax
import jax.numpy as jnp
from jax.experimental import pallas as pl
from jax.experimental.pallas import tpu as pltpu


def _diff_mhsa_kernel(xq_ref, wq_ref, k_ref, v_ref, small_ref, wo_ref, bo_ref,
                      out_ref, *, lambda_init, rms_eps):
    """One (batch, query-tile, head) grid step.

    xq_ref   : (TQ, E)      bf16  query rows for this tile
    wq_ref   : (2, E, Dh)   bf16  per-head Wq split into (q1 | q2) slabs,
                                   1/sqrt(Dh) score scale pre-folded
    k_ref    : (2, S, Dh)   bf16  per-(b,h) K split into (k1 | k2) slabs
    v_ref    : (S, D)       bf16  per-(b,h) V
    small_ref: (3, D)       f32   rows: bq (scaled), rms_weight, lambda (splat)
    wo_ref   : (D, E_out)   bf16  per-head slice of the output projection
    bo_ref   : (1, E_out)   f32   output projection bias
    out_ref  : (TQ, E_out)  f32   resident output tile, accumulated over heads
    """
    h = pl.program_id(2)

    Dh = wq_ref.shape[-1]

    xq = xq_ref[...]                                                    # (TQ, E) bf16
    small = small_ref[...]                                              # (3, D)  f32
    bq = small[0:1, :]                                                  # (1, D)

    # Q projection (score scale already folded into wq/bq host-side).
    q1 = jnp.dot(xq, wq_ref[0], preferred_element_type=jnp.float32) + bq[:, :Dh]
    q2 = jnp.dot(xq, wq_ref[1], preferred_element_type=jnp.float32) + bq[:, Dh:]

    # Dual attention scores: bf16 MXU operands, f32 accumulation.
    nt = (((1,), (1,)), ((), ()))   # contract last dims (q @ k.T without transpose)
    s1 = jax.lax.dot_general(q1.astype(jnp.bfloat16), k_ref[0], nt,
                             preferred_element_type=jnp.float32)        # (TQ, S)
    s2 = jax.lax.dot_general(q2.astype(jnp.bfloat16), k_ref[1], nt,
                             preferred_element_type=jnp.float32)        # (TQ, S)
    # TODO(synk): optional boolean attention mask (masked_fill with -inf) not implemented (mask=None path).
    # TODO(synk): for very long S (>= ~2-4K) switch this stage to KV-tiled online softmax.

    # Manual softmax: f32 max-subtract + exp, approx reciprocal (EUP) for denoms.
    e1 = jnp.exp(s1 - jnp.max(s1, axis=-1, keepdims=True))
    e2 = jnp.exp(s2 - jnp.max(s2, axis=-1, keepdims=True))
    inv1 = pl.reciprocal(jnp.sum(e1, axis=-1, keepdims=True), approx=True)
    lam = small[2:3, 0:1]                                               # (1, 1) per-head lambda
    inv2 = lam * pl.reciprocal(jnp.sum(e2, axis=-1, keepdims=True), approx=True)
    w = e1 * inv1 - e2 * inv2                                           # (TQ, S) f32
    # dropout(p=0.0) is the identity.

    head_out = jnp.dot(w.astype(jnp.bfloat16), v_ref[...],
                       preferred_element_type=jnp.float32)              # (TQ, D)

    # RMSNorm over head_dim, then (1 - lambda_init) scaling.
    ms = jnp.mean(head_out * head_out, axis=-1, keepdims=True)
    normed = head_out * jax.lax.rsqrt(ms + rms_eps) * small[1:2, :]
    normed = (1.0 - lambda_init) * normed

    # This head's contribution to the final linear projection.
    partial_out = jnp.dot(normed.astype(jnp.bfloat16), wo_ref[...],
                          preferred_element_type=jnp.float32)           # (TQ, E_out)

    @pl.when(h == 0)
    def _():
        out_ref[...] = (partial_out + bo_ref[...]).astype(out_ref.dtype)

    @pl.when(h > 0)
    def _():
        out_ref[...] += partial_out.astype(out_ref.dtype)


def _vmem_bytes_estimate(S, TQ, E, D, E_out):
    f32, bf16 = 4, 2
    # Double-buffered pipeline blocks (inputs + output).
    blocks = 2 * (TQ * E * bf16          # x query tile
                  + E * D * bf16         # Wq split
                  + S * D * bf16         # K split
                  + S * D * bf16         # V
                  + 3 * D * f32          # packed small params
                  + D * E_out * bf16     # Wo slice
                  + E_out * f32          # bo
                  + TQ * E_out * f32)    # output tile
    # Live in-kernel intermediates (dual f32 score/exp matrices dominate).
    interm = ((4 * TQ * S + 2 * TQ * D + TQ * E_out + 4 * TQ) * f32
              + (TQ * S + S * D + TQ * D) * bf16)
    return blocks + interm


def _pick_query_tile(S, E, D, E_out, budget):
    """Largest query tile (multiple of 8, dividing S) that fits the VMEM budget."""
    if S <= 256:
        return S
    candidates = [t for t in (1024, 512, 256, 128, 64, 32, 16, 8)
                  if t < S and S % t == 0]
    for tq in candidates:
        if _vmem_bytes_estimate(S, tq, E, D, E_out) <= budget:
            return tq
    if candidates:
        return candidates[-1]   # best effort: smallest divisor that is a multiple of 8
    return S                    # no suitable divisor; fall back to full rows


def _physical_vmem_bytes():
    try:
        info = pltpu.get_tpu_info()
        cap = int(getattr(info, "vmem_capacity_bytes"))
        if cap > 0:
            return cap
    except Exception:
        pass
    return 64 * 2**20   # conservative fallback (v7x-sized)


def diff_mhsa(x, params, *, lambda_init=0.8, layer_index=0):
    """x: (B, S, E) float32. Returns (B, S, E_out) float32."""
    B, S, E = x.shape
    H, _, D = params["wq"].shape
    Dh = D // 2
    E_out = params["wo"].shape[-1]

    lambda_init_param = float(lambda_init - 0.6 * math.exp(-0.3 * layer_index))
    rms_eps = float(jnp.finfo(jnp.float32).eps)

    # Per-head scalar lambda precomputed once (depends only on h).
    lp = params["lambda_params"].astype(jnp.float32)                    # (H, 4, D)
    lam = (jnp.exp(jnp.sum(lp[:, 0] * lp[:, 1], axis=-1))
           - jnp.exp(jnp.sum(lp[:, 2] * lp[:, 3], axis=-1))
           + lambda_init_param)                                         # (H,)

    # Activations enter the kernel as bf16 (cast once here).
    x_bf = x.astype(jnp.bfloat16)

    # Q weights: 1/sqrt(Dh) score scale folded in, halves stored as separate
    # lane-contiguous slabs -> (H, 2, E, Dh).
    scale = 1.0 / math.sqrt(Dh)
    wq_f32 = params["wq"].astype(jnp.float32) * scale
    wq_split = jnp.stack([wq_f32[:, :, :Dh], wq_f32[:, :, Dh:]],
                         axis=1).astype(jnp.bfloat16)                   # (H, 2, E, Dh)
    bq_scaled = params["bq"].astype(jnp.float32) * scale                # (H, D)

    # K/V hoisted out of the query-tile loop: computed once per (b, h) by XLA.
    wk = params["wk"].astype(jnp.bfloat16)
    wv = params["wv"].astype(jnp.bfloat16)
    k_f32 = (jnp.einsum("bse,hed->bhsd", x_bf, wk,
                        preferred_element_type=jnp.float32)
             + params["bk"][None, :, None, :])                          # (B, H, S, D)
    v_f32 = (jnp.einsum("bse,hed->bhsd", x_bf, wv,
                        preferred_element_type=jnp.float32)
             + params["bv"][None, :, None, :])                          # (B, H, S, D)
    k_bf = jnp.stack([k_f32[..., :Dh], k_f32[..., Dh:]],
                     axis=2).astype(jnp.bfloat16)                       # (B, H, 2, S, Dh)
    v_bf = v_f32.astype(jnp.bfloat16)                                   # (B, H, S, D)

    wo = params["wo"].astype(jnp.bfloat16)                              # (H, D, E_out)
    bo = params["bo"].reshape(1, E_out).astype(jnp.float32)

    # Packed small per-head params (one DMA stream): [bq_scaled, rms_weight, lambda].
    small = jnp.stack(
        [bq_scaled, params["rmsw"].astype(jnp.float32),
         jnp.broadcast_to(lam[:, None], (H, D))], axis=1)               # (H, 3, D) f32

    # Generation-aware VMEM budget (v7x: 64 MiB physical, v5e/v6e: 128 MiB).
    vmem_cap = _physical_vmem_bytes()
    tile_budget = (3 * vmem_cap) // 4
    TQ = _pick_query_tile(S, E, D, E_out, tile_budget)
    assert S % TQ == 0, "query tile must divide sequence length"
    nq = S // TQ
    need = _vmem_bytes_estimate(S, TQ, E, D, E_out)
    vmem_limit = int(min(max(2 * need, 32 * 2**20), (82 * vmem_cap) // 100))

    # TODO(synk): on v7x, when B*nq == 1 only one TensorCore gets work; splitting the
    # head axis across cores (with a cross-core combine) is not implemented.

    kernel = partial(_diff_mhsa_kernel,
                     lambda_init=float(lambda_init), rms_eps=rms_eps)

    return pl.pallas_call(
        kernel,
        out_shape=jax.ShapeDtypeStruct((B, S, E_out), jnp.float32),
        grid_spec=pltpu.PrefetchScalarGridSpec(
            num_scalar_prefetch=0,
            grid=(B, nq, H),
            in_specs=[
                pl.BlockSpec((None, TQ, E), lambda b, qi, h: (b, qi, 0)),            # x query tile (bf16)
                pl.BlockSpec((None, 2, E, Dh), lambda b, qi, h: (h, 0, 0, 0)),       # Wq split per head
                pl.BlockSpec((None, None, 2, S, Dh),
                             lambda b, qi, h: (b, h, 0, 0, 0)),                      # K split per (b, h)
                pl.BlockSpec((None, None, S, D), lambda b, qi, h: (b, h, 0, 0)),     # V per (b, h)
                pl.BlockSpec((None, 3, D), lambda b, qi, h: (h, 0, 0)),              # packed small params
                pl.BlockSpec((None, D, E_out), lambda b, qi, h: (h, 0, 0)),          # W_out slice per head
                pl.BlockSpec((1, E_out), lambda b, qi, h: (0, 0)),                   # b_out
            ],
            out_specs=pl.BlockSpec((None, TQ, E_out), lambda b, qi, h: (b, qi, 0)),
        ),
        compiler_params=pltpu.CompilerParams(
            dimension_semantics=("parallel", "parallel", "arbitrary"),
            vmem_limit_bytes=vmem_limit),
    )(x_bf, wq_split, k_bf, v_bf, small, wo, bo)


def diff_mhsa_reference(x, params, *, lambda_init=0.8, layer_index=0):
    """Pure-JAX reference mirroring the PyTorch module."""
    H, E, D = params["wq"].shape
    lambda_init_param = lambda_init - 0.6 * math.exp(-0.3 * layer_index)
    rms_eps = jnp.finfo(jnp.float32).eps
    heads = []
    for h in range(H):
        q = x @ params["wq"][h] + params["bq"][h]
        k = x @ params["wk"][h] + params["bk"][h]
        v = x @ params["wv"][h] + params["bv"][h]
        Dh = D // 2
        q1, q2 = q[..., :Dh], q[..., Dh:]
        k1, k2 = k[..., :Dh], k[..., Dh:]
        s1 = q1 @ jnp.swapaxes(k1, -1, -2) / math.sqrt(Dh)
        s2 = q2 @ jnp.swapaxes(k2, -1, -2) / math.sqrt(Dh)
        sm1 = jax.nn.softmax(s1, axis=-1)
        sm2 = jax.nn.softmax(s2, axis=-1)
        lp = params["lambda_params"][h]
        lam = jnp.exp(jnp.dot(lp[0], lp[1])) - jnp.exp(jnp.dot(lp[2], lp[3])) + lambda_init_param
        ho = (sm1 - lam * sm2) @ v
        ms = jnp.mean(ho * ho, axis=-1, keepdims=True)
        ho = ho * jax.lax.rsqrt(ms + rms_eps) * params["rmsw"][h]
        heads.append((1.0 - lambda_init) * ho)
    cat = jnp.concatenate(heads, axis=-1)                 # (B, S, H*D)
    wo_full = params["wo"].reshape(H * D, -1)
    return cat @ wo_full + params["bo"]


def init_params(key, num_heads, embed_dim, d_model):
    D = d_model // num_heads
    keys = jax.random.split(key, 12)
    p = {
        "wq": 0.1 * jax.random.normal(keys[0], (num_heads, embed_dim, D), jnp.float32),
        "wk": 0.1 * jax.random.normal(keys[1], (num_heads, embed_dim, D), jnp.float32),
        "wv": 0.1 * jax.random.normal(keys[2], (num_heads, embed_dim, D), jnp.float32),
        "bq": 0.05 * jax.random.normal(keys[3], (num_heads, D), jnp.float32),
        "bk": 0.05 * jax.random.normal(keys[4], (num_heads, D), jnp.float32),
        "bv": 0.05 * jax.random.normal(keys[5], (num_heads, D), jnp.float32),
        # stacked [lambda_q1, lambda_k1, lambda_q2, lambda_k2] per head
        "lambda_params": 0.2 * jax.random.normal(keys[6], (num_heads, 4, D), jnp.float32),
        "rmsw": jnp.ones((num_heads, D), jnp.float32),    # nn.RMSNorm weight init = ones
        # final linear: (d_model, embed_dim) split per head along its input dim
        "wo": 0.1 * jax.random.normal(keys[7], (num_heads, D, embed_dim), jnp.float32),
        "bo": 0.05 * jax.random.normal(keys[8], (embed_dim,), jnp.float32),
    }
    return p


if __name__ == "__main__":
    B, S = 2, 8
    num_heads, embed_dim, d_model = 2, 32, 32

    key = jax.random.PRNGKey(0)
    kx, kp = jax.random.split(key)
    x = jax.random.normal(kx, (B, S, embed_dim), jnp.float32)
    params = init_params(kp, num_heads, embed_dim, d_model)

    out = diff_mhsa(x, params, lambda_init=0.8, layer_index=0)
    out = jax.block_until_ready(out)

    ref = diff_mhsa_reference(x, params, lambda_init=0.8, layer_index=0)
    assert out.shape == (B, S, embed_dim)
    # bf16 MXU operands + approx reciprocal => slightly looser tolerance than pure f32.
    assert jnp.allclose(out, ref, atol=2e-2, rtol=2e-2), "mismatch vs pure-JAX reference"

    print("KERNEL_OK")
</pallas_src>

<mosaic_0001>
module attributes {stable_mosaic.version = 11 : i64} {
  func.func @_diff_mhsa_kernel(%arg0: i32, %arg1: i32, %arg2: i32, %arg3: memref<1x8x32xbf16, #tpu.memory_space<vmem>>, %arg4: memref<1x2x32x8xbf16, #tpu.memory_space<vmem>>, %arg5: memref<1x1x2x8x8xbf16, #tpu.memory_space<vmem>>, %arg6: memref<1x1x8x16xbf16, #tpu.memory_space<vmem>>, %arg7: memref<1x3x16xf32, #tpu.memory_space<vmem>>, %arg8: memref<1x16x32xbf16, #tpu.memory_space<vmem>>, %arg9: memref<1x32xf32, #tpu.memory_space<vmem>>, %arg10: memref<1x8x32xf32, #tpu.memory_space<vmem>>) attributes {dimension_semantics = [#tpu.dimension_semantics<parallel>, #tpu.dimension_semantics<parallel>, #tpu.dimension_semantics<arbitrary>], iteration_bounds = array<i64: 2, 1, 2>, scalar_prefetch = 0 : i64, scratch_operands = 0 : i64, tpu.core_type = #tpu.core_type<tc>, window_params = [{transform_indices = @transform_0, window_bounds = array<i64: 1, 8, 32>}, {transform_indices = @transform_1, window_bounds = array<i64: 1, 2, 32, 8>}, {transform_indices = @transform_2, window_bounds = array<i64: 1, 1, 2, 8, 8>}, {transform_indices = @transform_3, window_bounds = array<i64: 1, 1, 8, 16>}, {transform_indices = @transform_4, window_bounds = array<i64: 1, 3, 16>}, {transform_indices = @transform_5, window_bounds = array<i64: 1, 16, 32>}, {pipeline_mode = #tpu.pipeline_mode<synchronous>, transform_indices = @transform_6, window_bounds = array<i64: 1, 32>}, {transform_indices = @transform_7, window_bounds = array<i64: 1, 8, 32>}]} {
    %c0 = arith.constant 0 : index
    %c0_0 = arith.constant 0 : index
    %c0_1 = arith.constant 0 : index
    %0 = vector.load %arg3[%c0, %c0_0, %c0_1] : memref<1x8x32xbf16, #tpu.memory_space<vmem>>, vector<1x8x32xbf16>
    %1 = vector.shape_cast %0 : vector<1x8x32xbf16> to vector<8x32xbf16>
    %c0_2 = arith.constant 0 : index
    %c0_3 = arith.constant 0 : index
    %c0_4 = arith.constant 0 : index
    %2 = vector.load %arg7[%c0_2, %c0_3, %c0_4] : memref<1x3x16xf32, #tpu.memory_space<vmem>>, vector<1x3x16xf32>
    %3 = vector.shape_cast %2 : vector<1x3x16xf32> to vector<3x16xf32>
    %4 = vector.extract_strided_slice %3 {offsets = [0, 0], sizes = [1, 16], strides = [1, 1]} : vector<3x16xf32> to vector<1x16xf32>
    %c0_5 = arith.constant 0 : index
    %c0_6 = arith.constant 0 : index
    %c0_7 = arith.constant 0 : index
    %c0_8 = arith.constant 0 : index
    %5 = vector.load %arg4[%c0_5, %c0_6, %c0_7, %c0_8] : memref<1x2x32x8xbf16, #tpu.memory_space<vmem>>, vector<1x1x32x8xbf16>
    %6 = vector.shape_cast %5 : vector<1x1x32x8xbf16> to vector<32x8xbf16>
    %cst = arith.constant dense<0.000000e+00> : vector<8x8xf32>
    %7 = tpu.matmul %1, %6, %cst {dimension_numbers = #tpu.dot_dimension_numbers<[1], [0], [0], [1], [0, 0, 1, 1], [], []>} : vector<8x32xbf16>, vector<32x8xbf16>, vector<8x8xf32> -> vector<8x8xf32>
    %8 = vector.extract_strided_slice %4 {offsets = [0, 0], sizes = [1, 8], strides = [1, 1]} : vector<1x16xf32> to vector<1x8xf32>
    %9 = vector.broadcast %8 : vector<1x8xf32> to vector<8x8xf32>
    %10 = arith.addf %7, %9 : vector<8x8xf32>
    %c0_9 = arith.constant 0 : index
    %c1 = arith.constant 1 : index
    %c0_10 = arith.constant 0 : index
    %c0_11 = arith.constant 0 : index
    %11 = vector.load %arg4[%c0_9, %c1, %c0_10, %c0_11] : memref<1x2x32x8xbf16, #tpu.memory_space<vmem>>, vector<1x1x32x8xbf16>
    %12 = vector.shape_cast %11 : vector<1x1x32x8xbf16> to vector<32x8xbf16>
    %cst_12 = arith.constant dense<0.000000e+00> : vector<8x8xf32>
    %13 = tpu.matmul %1, %12, %cst_12 {dimension_numbers = #tpu.dot_dimension_numbers<[1], [0], [0], [1], [0, 0, 1, 1], [], []>} : vector<8x32xbf16>, vector<32x8xbf16>, vector<8x8xf32> -> vector<8x8xf32>
    %14 = vector.extract_strided_slice %4 {offsets = [0, 8], sizes = [1, 8], strides = [1, 1]} : vector<1x16xf32> to vector<1x8xf32>
    %15 = vector.broadcast %14 : vector<1x8xf32> to vector<8x8xf32>
    %16 = arith.addf %13, %15 : vector<8x8xf32>
    %17 = arith.truncf %10 : vector<8x8xf32> to vector<8x8xbf16>
    %c0_13 = arith.constant 0 : index
    %c0_14 = arith.constant 0 : index
    %c0_15 = arith.constant 0 : index
    %c0_16 = arith.constant 0 : index
    %c0_17 = arith.constant 0 : index
    %18 = vector.load %arg5[%c0_13, %c0_14, %c0_15, %c0_16, %c0_17] : memref<1x1x2x8x8xbf16, #tpu.memory_space<vmem>>, vector<1x1x1x8x8xbf16>
    %19 = vector.shape_cast %18 : vector<1x1x1x8x8xbf16> to vector<8x8xbf16>
    %cst_18 = arith.constant dense<0.000000e+00> : vector<8x8xf32>
    %20 = tpu.matmul %17, %19, %cst_18 {dimension_numbers = #tpu.dot_dimension_numbers<[1], [1], [0], [0], [0, 0, 1, 0], [], []>} : vector<8x8xbf16>, vector<8x8xbf16>, vector<8x8xf32> -> vector<8x8xf32>
    %21 = arith.truncf %16 : vector<8x8xf32> to vector<8x8xbf16>
    %c0_19 = arith.constant 0 : index
    %c0_20 = arith.constant 0 : index
    %c1_21 = arith.constant 1 : index
    %c0_22 = arith.constant 0 : index
    %c0_23 = arith.constant 0 : index
    %22 = vector.load %arg5[%c0_19, %c0_20, %c1_21, %c0_22, %c0_23] : memref<1x1x2x8x8xbf16, #tpu.memory_space<vmem>>, vector<1x1x1x8x8xbf16>
    %23 = vector.shape_cast %22 : vector<1x1x1x8x8xbf16> to vector<8x8xbf16>
    %cst_24 = arith.constant dense<0.000000e+00> : vector<8x8xf32>
    %24 = tpu.matmul %21, %23, %cst_24 {dimension_numbers = #tpu.dot_dimension_numbers<[1], [1], [0], [0], [0, 0, 1, 0], [], []>} : vector<8x8xbf16>, vector<8x8xbf16>, vector<8x8xf32> -> vector<8x8xf32>
    %cst_25 = arith.constant dense<0xFF800000> : vector<8xf32>
    %25 = vector.multi_reduction <maximumf>, %20, %cst_25 [1] : vector<8x8xf32> to vector<8xf32>
    %26 = vector.shape_cast %25 : vector<8xf32> to vector<8x1xf32>
    %27 = vector.broadcast %26 : vector<8x1xf32> to vector<8x8xf32>
    %28 = arith.subf %20, %27 : vector<8x8xf32>
    %29 = math.exp %28 : vector<8x8xf32>
    %cst_26 = arith.constant dense<0xFF800000> : vector<8xf32>
    %30 = vector.multi_reduction <maximumf>, %24, %cst_26 [1] : vector<8x8xf32> to vector<8xf32>
    %31 = vector.shape_cast %30 : vector<8xf32> to vector<8x1xf32>
    %32 = vector.broadcast %31 : vector<8x1xf32> to vector<8x8xf32>
    %33 = arith.subf %24, %32 : vector<8x8xf32>
    %34 = math.exp %33 : vector<8x8xf32>
    %cst_27 = arith.constant dense<0.000000e+00> : vector<8xf32>
    %35 = vector.multi_reduction <add>, %29, %cst_27 [1] : vector<8x8xf32> to vector<8xf32>
    %36 = vector.shape_cast %35 : vector<8xf32> to vector<8x1xf32>
    %37 = tpu.reciprocal %36 {approx = true} : vector<8x1xf32> -> vector<8x1xf32>
    %38 = vector.extract_strided_slice %3 {offsets = [2, 0], sizes = [1, 1], strides = [1, 1]} : vector<3x16xf32> to vector<1x1xf32>
    %cst_28 = arith.constant dense<0.000000e+00> : vector<8xf32>
    %39 = vector.multi_reduction <add>, %34, %cst_28 [1] : vector<8x8xf32> to vector<8xf32>
    %40 = vector.shape_cast %39 : vector<8xf32> to vector<8x1xf32>
    %41 = tpu.reciprocal %40 {approx = true} : vector<8x1xf32> -> vector<8x1xf32>
    %42 = vector.broadcast %38 : vector<1x1xf32> to vector<8x1xf32>
    %43 = arith.mulf %42, %41 : vector<8x1xf32>
    %44 = vector.broadcast %37 : vector<8x1xf32> to vector<8x8xf32>
    %45 = arith.mulf %29, %44 : vector<8x8xf32>
    %46 = vector.broadcast %43 : vector<8x1xf32> to vector<8x8xf32>
    %47 = arith.mulf %34, %46 : vector<8x8xf32>
    %48 = arith.subf %45, %47 : vector<8x8xf32>
    %49 = arith.truncf %48 : vector<8x8xf32> to vector<8x8xbf16>
    %c0_29 = arith.constant 0 : index
    %c0_30 = arith.constant 0 : index
    %c0_31 = arith.constant 0 : index
    %c0_32 = arith.constant 0 : index
    %50 = vector.load %arg6[%c0_29, %c0_30, %c0_31, %c0_32] : memref<1x1x8x16xbf16, #tpu.memory_space<vmem>>, vector<1x1x8x16xbf16>
    %51 = vector.shape_cast %50 : vector<1x1x8x16xbf16> to vector<8x16xbf16>
    %cst_33 = arith.constant dense<0.000000e+00> : vector<8x16xf32>
    %52 = tpu.matmul %49, %51, %cst_33 {dimension_numbers = #tpu.dot_dimension_numbers<[1], [0], [0], [1], [0, 0, 1, 1], [], []>} : vector<8x8xbf16>, vector<8x16xbf16>, vector<8x16xf32> -> vector<8x16xf32>
    %53 = arith.mulf %52, %52 : vector<8x16xf32>
    %cst_34 = arith.constant dense<0.000000e+00> : vector<8xf32>
    %54 = vector.multi_reduction <add>, %53, %cst_34 [1] : vector<8x16xf32> to vector<8xf32>
    %55 = vector.shape_cast %54 : vector<8xf32> to vector<8x1xf32>
    %cst_35 = arith.constant 1.600000e+01 : f32
    %56 = vector.broadcast %cst_35 : f32 to vector<8x1xf32>
    %57 = arith.divf %55, %56 : vector<8x1xf32>
    %cst_36 = arith.constant 1.1920929E-7 : f32
    %58 = vector.broadcast %cst_36 : f32 to vector<8x1xf32>
    %59 = arith.addf %57, %58 : vector<8x1xf32>
    %60 = math.rsqrt %59 : vector<8x1xf32>
    %61 = vector.broadcast %60 : vector<8x1xf32> to vector<8x16xf32>
    %62 = arith.mulf %52, %61 : vector<8x16xf32>
    %63 = vector.extract_strided_slice %3 {offsets = [1, 0], sizes = [1, 16], strides = [1, 1]} : vector<3x16xf32> to vector<1x16xf32>
    %64 = vector.broadcast %63 : vector<1x16xf32> to vector<8x16xf32>
    %65 = arith.mulf %62, %64 : vector<8x16xf32>
    %cst_37 = arith.constant 2.000000e-01 : f32
    %66 = vector.broadcast %cst_37 : f32 to vector<8x16xf32>
    %67 = arith.mulf %66, %65 : vector<8x16xf32>
    %68 = arith.truncf %67 : vector<8x16xf32> to vector<8x16xbf16>
    %c0_38 = arith.constant 0 : index
    %c0_39 = arith.constant 0 : index
    %c0_40 = arith.constant 0 : index
    %69 = vector.load %arg8[%c0_38, %c0_39, %c0_40] : memref<1x16x32xbf16, #tpu.memory_space<vmem>>, vector<1x16x32xbf16>
    %70 = vector.shape_cast %69 : vector<1x16x32xbf16> to vector<16x32xbf16>
    %cst_41 = arith.constant dense<0.000000e+00> : vector<8x32xf32>
    %71 = tpu.matmul %68, %70, %cst_41 {dimension_numbers = #tpu.dot_dimension_numbers<[1], [0], [0], [1], [0, 0, 1, 1], [], []>} : vector<8x16xbf16>, vector<16x32xbf16>, vector<8x32xf32> -> vector<8x32xf32>
    %c0_i32 = arith.constant 0 : i32
    %72 = arith.cmpi eq, %arg2, %c0_i32 : i32
    %73 = arith.extui %72 : i1 to i32
    %c0_i32_42 = arith.constant 0 : i32
    %74 = arith.cmpi ne, %73, %c0_i32_42 : i32
    scf.if %74 {
      %c0_45 = arith.constant 0 : index
      %c0_46 = arith.constant 0 : index
      %78 = vector.load %arg9[%c0_45, %c0_46] : memref<1x32xf32, #tpu.memory_space<vmem>>, vector<1x32xf32>
      %79 = vector.broadcast %78 : vector<1x32xf32> to vector<8x32xf32>
      %80 = arith.addf %71, %79 : vector<8x32xf32>
      %c0_47 = arith.constant 0 : index
      %c0_48 = arith.constant 0 : index
      %c0_49 = arith.constant 0 : index
      %81 = vector.load %arg10[%c0_47, %c0_48, %c0_49] : memref<1x8x32xf32, #tpu.memory_space<vmem>>, vector<1x8x32xf32>
      %82 = vector.shape_cast %81 : vector<1x8x32xf32> to vector<8x32xf32>
      %83 = vector.shape_cast %80 : vector<8x32xf32> to vector<1x8x32xf32>
      tpu.vector_store %arg10[%c0_47, %c0_48, %c0_49], %83 {strides = array<i32>} : memref<1x8x32xf32, #tpu.memory_space<vmem>>, vector<1x8x32xf32>,
    } else {
    }
    %c0_i32_43 = arith.constant 0 : i32
    %75 = arith.cmpi sgt, %arg2, %c0_i32_43 : i32
    %76 = arith.extui %75 : i1 to i32
    %c0_i32_44 = arith.constant 0 : i32
    %77 = arith.cmpi ne, %76, %c0_i32_44 : i32
    scf.if %77 {
      %c0_45 = arith.constant 0 : index
      %c0_46 = arith.constant 0 : index
      %c0_47 = arith.constant 0 : index
      %78 = vector.load %arg10[%c0_45, %c0_46, %c0_47] : memref<1x8x32xf32, #tpu.memory_space<vmem>>, vector<1x8x32xf32>
      %79 = vector.shape_cast %78 : vector<1x8x32xf32> to vector<8x32xf32>
      %80 = arith.addf %79, %71 : vector<8x32xf32>
      %c0_48 = arith.constant 0 : index
      %c0_49 = arith.constant 0 : index
      %c0_50 = arith.constant 0 : index
      %81 = vector.load %arg10[%c0_48, %c0_49, %c0_50] : memref<1x8x32xf32, #tpu.memory_space<vmem>>, vector<1x8x32xf32>
      %82 = vector.shape_cast %81 : vector<1x8x32xf32> to vector<8x32xf32>
      %83 = vector.shape_cast %80 : vector<8x32xf32> to vector<1x8x32xf32>
      tpu.vector_store %arg10[%c0_48, %c0_49, %c0_50], %83 {strides = array<i32>} : memref<1x8x32xf32, #tpu.memory_space<vmem>>, vector<1x8x32xf32>,
    } else {
    }
    return
  }
  func.func @transform_0(%arg0: i32, %arg1: i32, %arg2: i32) -> (i32, i32, i32) {
    %c0_i32 = arith.constant 0 : i32
    %c0_i32_0 = arith.constant 0 : i32
    return %arg0, %arg1, %c0_i32 : i32, i32, i32
  }
  func.func @transform_1(%arg0: i32, %arg1: i32, %arg2: i32) -> (i32, i32, i32, i32) {
    %c0_i32 = arith.constant 0 : i32
    %c0_i32_0 = arith.constant 0 : i32
    %c0_i32_1 = arith.constant 0 : i32
    %c0_i32_2 = arith.constant 0 : i32
    return %arg2, %c0_i32, %c0_i32_0, %c0_i32_1 : i32, i32, i32, i32
  }
  func.func @transform_2(%arg0: i32, %arg1: i32, %arg2: i32) -> (i32, i32, i32, i32, i32) {
    %c0_i32 = arith.constant 0 : i32
    %c0_i32_0 = arith.constant 0 : i32
    %c0_i32_1 = arith.constant 0 : i32
    %c0_i32_2 = arith.constant 0 : i32
    return %arg0, %arg2, %c0_i32, %c0_i32_0, %c0_i32_1 : i32, i32, i32, i32, i32
  }
  func.func @transform_3(%arg0: i32, %arg1: i32, %arg2: i32) -> (i32, i32, i32, i32) {
    %c0_i32 = arith.constant 0 : i32
    %c0_i32_0 = arith.constant 0 : i32
    %c0_i32_1 = arith.constant 0 : i32
    return %arg0, %arg2, %c0_i32, %c0_i32_0 : i32, i32, i32, i32
  }
  func.func @transform_4(%arg0: i32, %arg1: i32, %arg2: i32) -> (i32, i32, i32) {
    %c0_i32 = arith.constant 0 : i32
    %c0_i32_0 = arith.constant 0 : i32
    %c0_i32_1 = arith.constant 0 : i32
    return %arg2, %c0_i32, %c0_i32_0 : i32, i32, i32
  }
  func.func @transform_5(%arg0: i32, %arg1: i32, %arg2: i32) -> (i32, i32, i32) {
    %c0_i32 = arith.constant 0 : i32
    %c0_i32_0 = arith.constant 0 : i32
    %c0_i32_1 = arith.constant 0 : i32
    return %arg2, %c0_i32, %c0_i32_0 : i32, i32, i32
  }
  func.func @transform_6(%arg0: i32, %arg1: i32, %arg2: i32) -> (i32, i32) {
    %c0_i32 = arith.constant 0 : i32
    %c0_i32_0 = arith.constant 0 : i32
    %c0_i32_1 = arith.constant 0 : i32
    return %c0_i32, %c0_i32_0 : i32, i32
  }
  func.func @transform_7(%arg0: i32, %arg1: i32, %arg2: i32) -> (i32, i32, i32) {
    %c0_i32 = arith.constant 0 : i32
    %c0_i32_0 = arith.constant 0 : i32
    return %arg0, %arg1, %c0_i32 : i32, i32, i32
  }
}

</mosaic_0001>

<llo_original>
// kernel: tpu_custom_call.1
$region0: #{tpu_custom_call.1}
  #allocation0 [shape = 'u32[]', space=smem, size = 0x4, offset = 0x4, fixed_abs, tag = 'smem constant byte address 0x4 - core index']
  #allocation1 [shape = 'u32[144,128]{1,0:T(1,128)}', space=vmem, size = 0x12000, scoped, tag = 'internal scratch']
  %s0 = inlined_call_operand.vmem [shape: bf16[2,8,32], index: 0, kind: input, shape index: {}]
  %s1 = inlined_call_operand.vmem [shape: bf16[2,2,32,8], index: 1, kind: input, shape index: {}]
  %s2 = inlined_call_operand.vmem [shape: bf16[2,2,2,8,8], index: 2, kind: input, shape index: {}]
  %s3 = inlined_call_operand.vmem [shape: bf16[2,2,8,16], index: 3, kind: input, shape index: {}]
  %s4 = inlined_call_operand.vmem [shape: f32[2,3,16], index: 4, kind: input, shape index: {}]
  %s5 = inlined_call_operand.vmem [shape: bf16[2,16,32], index: 5, kind: input, shape index: {}]
  %s6 = inlined_call_operand.vmem [shape: f32[1,32], index: 6, kind: input, shape index: {}]
  %s7 = inlined_call_operand.hbm [shape: f32[2,8,32], index: 7, kind: output, shape index: {}]
  %s8 = sld [smem:[#allocation0]]
  $region69: #{tpu_custom_call.1} parent=0
    _
  %s10 = ssub.s32 1, %s8
  %s11 = scalar_select 0, %s10, %s8
  $region1: #{tpu_custom_call.1} parent=0
    #allocation2 [shape = 'u8[8192]{0}', space=vmem, size = 0x2000, scoped, tag = 'output window, operand 0']
    #allocation3 [shape = 's32[2]{0}', space=sflag, size = 0x8, scoped, tag = 'scoped memory for tpu_custom_call.1']
    %12 = vsyncpa [#allocation3], 0
    %s13 = scalar_lea.sflag [#allocation3], 1
    %14 = vsyncpa %s13, 0
    loop: start=0, step=1, limit=6
    $region2: #{tpu_custom_call.1} parent=1 // loop_pre_header
      _
    $region3: #{tpu_custom_call.1} parent=1 // loop_header
      %s16 = sphi 0, %s20
      %p17 = scmp.ge.s32.totalorder %s16, 6
      %s23 = sphi 0, %s42
      %s24 = sphi 0, %s38
      %s25 = sphi 0, %s34
      %s26 = sphi 0, %s23
      %s27 = sphi 0, %s24
      %s28 = sphi 0, %s25
      %s29 = sphi 0, %s26
      %s30 = sphi 0, %s27
      %s31 = sphi 0, %s28
      %s47 = sphi 0, %s49
      %s50 = sphi 0, %s47
      %s51 = sphi 0, %s50
      %s67 = sphi 0, %s51
      %s73 = sphi 0, %s75
      %s76 = sphi 0, %s73
      %s77 = sphi 0, %s76
      %s93 = sphi 0, %s77
      %s101 = sphi 0, %s103
      %s104 = sphi 0, %s101
      %s105 = sphi 0, %s104
      %s121 = sphi 0, %s105
      %s129 = sphi 0, %s131
      %s132 = sphi 0, %s129
      %s133 = sphi 0, %s132
      %s149 = sphi 0, %s133
      %s155 = sphi 0, %s157
      %s158 = sphi 0, %s155
      %s159 = sphi 0, %s158
      %s175 = sphi 0, %s159
      %s181 = sphi 0, %s183
      %s184 = sphi 0, %s181
      %s185 = sphi 0, %s184
      %s201 = sphi 0, %s185
      %s205 = sphi 0, %s205
      %s207 = sphi 0, %s205
      %s208 = sphi 0, %s207
      %s222 = sphi 0, %s208
      %s230 = sphi 0, %s232
      %s233 = sphi 0, %s230
      %s234 = sphi 0, %s233
      %s250 = sphi 0, %s234
    $region4: #{tpu_custom_call.1} parent=1 // loop_header_branch
      %19 = sbr.rel (%p17) target = $region8
    $region5: #{tpu_custom_call.1} parent=1 // loop_body
      %s21 = ssub.s32 %s16, 1
      %s22 = ssub.s32 %s16, 2
      %s32 = sadd.s32 1, %s25
      %p33 = scmp.ge.s32.totalorder %s32, 2
      %s34 = scalar_select %p33, 0, %s32
      %s35 = sadd.s32 1, %s24
      %s36 = scalar_select %p33, %s35, %s24
      %p37 = scmp.ge.s32.totalorder %s36, 1
      %s38 = scalar_select %p37, 0, %s36
      %s39 = sadd.s32 1, %s23
      %s40 = scalar_select %p37, %s39, %s23
      %p41 = scmp.ge.s32.totalorder %s40, 2
      %s42 = scalar_select %p41, 0, %s40
      %s43 = ssub.s32 %s23, %s42
      %s44 = ssub.s32 %s24, %s38
      %s45 = sor.u32 %s43, %s44
      %p46 = scmp.eq.s32.totalorder %s45, 0
      %s48 = sadd.s32 %s47, 1
      %s49 = scalar_select %p46, %s47, %s48
      %p52 = pneg %p46
      %p53 = scmp.eq.s32.totalorder %s16, 3
      %p54 = por %p52, %p53
      %p55 = scmp.ne.s32.totalorder %s47, %s50
      %p56 = scmp.eq.s32.totalorder %s16, 0
      %p57 = por %p55, %p56
      %p58 = scmp.ne.s32.totalorder %s47, %s50
      %p59 = scmp.eq.s32.totalorder %s21, 3
      %p60 = por %p58, %p59
      %p61 = scmp.ne.s32.totalorder %s50, %s51
      %p62 = scmp.eq.s32.totalorder %s21, 0
      %p63 = por %p61, %p62
      %p64 = scmp.ne.s32.totalorder %s50, %s51
      %p65 = scmp.eq.s32.totalorder %s22, 3
      %p66 = por %p64, %p65
      %p68 = scmp.ne.s32.totalorder %s51, %s67
      %p69 = scmp.eq.s32.totalorder %s22, 0
      %p70 = por %p68, %p69
      %s71 = ssub.s32 %s25, %s34
      %p72 = scmp.eq.s32.totalorder %s71, 0
      %s74 = sadd.s32 %s73, 1
      %s75 = scalar_select %p72, %s73, %s74
      %p78 = pneg %p72
      %p79 = scmp.eq.s32.totalorder %s16, 3
      %p80 = por %p78, %p79
      %p81 = scmp.ne.s32.totalorder %s73, %s76
      %p82 = scmp.eq.s32.totalorder %s16, 0
      %p83 = por %p81, %p82
      %p84 = scmp.ne.s32.totalorder %s73, %s76
      %p85 = scmp.eq.s32.totalorder %s21, 3
      %p86 = por %p84, %p85
      %p87 = scmp.ne.s32.totalorder %s76, %s77
      %p88 = scmp.eq.s32.totalorder %s21, 0
      %p89 = por %p87, %p88
      %p90 = scmp.ne.s32.totalorder %s76, %s77
      %p91 = scmp.eq.s32.totalorder %s22, 3
      %p92 = por %p90, %p91
      %p94 = scmp.ne.s32.totalorder %s77, %s93
      %p95 = scmp.eq.s32.totalorder %s22, 0
      %p96 = por %p94, %p95
      %s97 = ssub.s32 %s23, %s42
      %s98 = ssub.s32 %s25, %s34
      %s99 = sor.u32 %s97, %s98
      %p100 = scmp.eq.s32.totalorder %s99, 0
      %s102 = sadd.s32 %s101, 1
      %s103 = scalar_select %p100, %s101, %s102
      %p106 = pneg %p100
      %p107 = scmp.eq.s32.totalorder %s16, 3
      %p108 = por %p106, %p107
      %p109 = scmp.ne.s32.totalorder %s101, %s104
      %p110 = scmp.eq.s32.totalorder %s16, 0
      %p111 = por %p109, %p110
      %p112 = scmp.ne.s32.totalorder %s101, %s104
      %p113 = scmp.eq.s32.totalorder %s21, 3
      %p114 = por %p112, %p113
      %p115 = scmp.ne.s32.totalorder %s104, %s105
      %p116 = scmp.eq.s32.totalorder %s21, 0
      %p117 = por %p115, %p116
      %p118 = scmp.ne.s32.totalorder %s104, %s105
      %p119 = scmp.eq.s32.totalorder %s22, 3
      %p120 = por %p118, %p119
      %p122 = scmp.ne.s32.totalorder %s105, %s121
      %p123 = scmp.eq.s32.totalorder %s22, 0
      %p124 = por %p122, %p123
      %s125 = ssub.s32 %s23, %s42
      %s126 = ssub.s32 %s25, %s34
      %s127 = sor.u32 %s125, %s126
      %p128 = scmp.eq.s32.totalorder %s127, 0
      %s130 = sadd.s32 %s129, 1
      %s131 = scalar_select %p128, %s129, %s130
      %p134 = pneg %p128
      %p135 = scmp.eq.s32.totalorder %s16, 3
      %p136 = por %p134, %p135
      %p137 = scmp.ne.s32.totalorder %s129, %s132
      %p138 = scmp.eq.s32.totalorder %s16, 0
      %p139 = por %p137, %p138
      %p140 = scmp.ne.s32.totalorder %s129, %s132
      %p141 = scmp.eq.s32.totalorder %s21, 3
      %p142 = por %p140, %p141
      %p143 = scmp.ne.s32.totalorder %s132, %s133
      %p144 = scmp.eq.s32.totalorder %s21, 0
      %p145 = por %p143, %p144
      %p146 = scmp.ne.s32.totalorder %s132, %s133
      %p147 = scmp.eq.s32.totalorder %s22, 3
      %p148 = por %p146, %p147
      %p150 = scmp.ne.s32.totalorder %s133, %s149
      %p151 = scmp.eq.s32.totalorder %s22, 0
      %p152 = por %p150, %p151
      %s153 = ssub.s32 %s25, %s34
      %p154 = scmp.eq.s32.totalorder %s153, 0
      %s156 = sadd.s32 %s155, 1
      %s157 = scalar_select %p154, %s155, %s156
      %p160 = pneg %p154
      %p161 = scmp.eq.s32.totalorder %s16, 3
      %p162 = por %p160, %p161
      %p163 = scmp.ne.s32.totalorder %s155, %s158
      %p164 = scmp.eq.s32.totalorder %s16, 0
      %p165 = por %p163, %p164
      %p166 = scmp.ne.s32.totalorder %s155, %s158
      %p167 = scmp.eq.s32.totalorder %s21, 3
      %p168 = por %p166, %p167
      %p169 = scmp.ne.s32.totalorder %s158, %s159
      %p170 = scmp.eq.s32.totalorder %s21, 0
      %p171 = por %p169, %p170
      %p172 = scmp.ne.s32.totalorder %s158, %s159
      %p173 = scmp.eq.s32.totalorder %s22, 3
      %p174 = por %p172, %p173
      %p176 = scmp.ne.s32.totalorder %s159, %s175
      %p177 = scmp.eq.s32.totalorder %s22, 0
      %p178 = por %p176, %p177
      %s179 = ssub.s32 %s25, %s34
      %p180 = scmp.eq.s32.totalorder %s179, 0
      %s182 = sadd.s32 %s181, 1
      %s183 = scalar_select %p180, %s181, %s182
      %p186 = pneg %p180
      %p187 = scmp.eq.s32.totalorder %s16, 3
      %p188 = por %p186, %p187
      %p189 = scmp.ne.s32.totalorder %s181, %s184
      %p190 = scmp.eq.s32.totalorder %s16, 0
      %p191 = por %p189, %p190
      %p192 = scmp.ne.s32.totalorder %s181, %s184
      %p193 = scmp.eq.s32.totalorder %s21, 3
      %p194 = por %p192, %p193
      %p195 = scmp.ne.s32.totalorder %s184, %s185
      %p196 = scmp.eq.s32.totalorder %s21, 0
      %p197 = por %p195, %p196
      %p198 = scmp.ne.s32.totalorder %s184, %s185
      %p199 = scmp.eq.s32.totalorder %s22, 3
      %p200 = por %p198, %p199
      %p202 = scmp.ne.s32.totalorder %s185, %s201
      %p203 = scmp.eq.s32.totalorder %s22, 0
      %p204 = por %p202, %p203
      %s206 = sadd.s32 %s205, 1
      %p209 = scmp.eq.s32.totalorder %s16, 3
      %p210 = scmp.ne.s32.totalorder %s205, %s207
      %p211 = scmp.eq.s32.totalorder %s16, 0
      %p212 = por %p210, %p211
      %p213 = scmp.ne.s32.totalorder %s205, %s207
      %p214 = scmp.eq.s32.totalorder %s21, 3
      %p215 = por %p213, %p214
      %p216 = scmp.ne.s32.totalorder %s207, %s208
      %p217 = scmp.eq.s32.totalorder %s21, 0
      %p218 = por %p216, %p217
      %p219 = scmp.ne.s32.totalorder %s207, %s208
      %p220 = scmp.eq.s32.totalorder %s22, 3
      %p221 = por %p219, %p220
      %p223 = scmp.ne.s32.totalorder %s208, %s222
      %p224 = scmp.eq.s32.totalorder %s22, 0
      %p225 = por %p223, %p224
      %s226 = ssub.s32 %s23, %s42
      %s227 = ssub.s32 %s24, %s38
      %s228 = sor.u32 %s226, %s227
      %p229 = scmp.eq.s32.totalorder %s228, 0
      %s231 = sadd.s32 %s230, 1
      %s232 = scalar_select %p229, %s230, %s231
      %p235 = pneg %p229
      %p236 = scmp.eq.s32.totalorder %s16, 3
      %p237 = por %p235, %p236
      %p238 = scmp.ne.s32.totalorder %s230, %s233
      %p239 = scmp.eq.s32.totalorder %s16, 0
      %p240 = por %p238, %p239
      %p241 = scmp.ne.s32.totalorder %s230, %s233
      %p242 = scmp.eq.s32.totalorder %s21, 3
      %p243 = por %p241, %p242
      %p244 = scmp.ne.s32.totalorder %s233, %s234
      %p245 = scmp.eq.s32.totalorder %s21, 0
      %p246 = por %p244, %p245
      %p247 = scmp.ne.s32.totalorder %s233, %s234
      %p248 = scmp.eq.s32.totalorder %s22, 3
      %p249 = por %p247, %p248
      %p251 = scmp.ne.s32.totalorder %s234, %s250
      %p252 = scmp.eq.s32.totalorder %s22, 0
      %p253 = por %p251, %p252
      %p254 = scmp.le.s32.totalorder 1, %s16
      %p255 = scmp.lt.s32.totalorder %s16, 5
      %p256 = pnand %p254, %p255
      %p257 = pneg %p256
      // Predicated region
      $region9: #{tpu_custom_call.1} parent=5 // pred_check
        _
      $region10: #{tpu_custom_call.1} parent=5 // pred_check_branch
        %259 = sbr.rel (%p256) target = $region12
      $region11: #{tpu_custom_call.1} parent=5 // pred_region
        %s260 = ssub.s32 %s16, 1
        // Predicated region
        $region13: #{tpu_custom_call.1} parent=11 // pred_check
          %p261 = pneg %p218
        $region14: #{tpu_custom_call.1} parent=11 // pred_check_branch
          %263 = sbr.rel (%p261) target = $region16
        $region15: #{tpu_custom_call.1} parent=11 // pred_region
          _
        $region16: #{tpu_custom_call.1} parent=11 // pred_fallthru
          _
      $region12: #{tpu_custom_call.1} parent=5 // pred_fallthru
        _
      %p264 = scmp.lt.s32.totalorder %s16, 4
      // Predicated region
      $region17: #{tpu_custom_call.1} parent=5 // pred_check
        %p265 = pneg %p264
      $region18: #{tpu_custom_call.1} parent=5 // pred_check_branch
        %267 = sbr.rel (%p265) target = $region20
      $region19: #{tpu_custom_call.1} parent=5 // pred_region
        // Predicated region
        $region21: #{tpu_custom_call.1} parent=19 // pred_check
          %p268 = pneg %p57
        $region22: #{tpu_custom_call.1} parent=19 // pred_check_branch
          %270 = sbr.rel (%p268) target = $region24
        $region23: #{tpu_custom_call.1} parent=19 // pred_region
          %p271 = scmp.lt.s32.totalorder %s23, 1
          %s272 = scalar_select %p271, %s23, 1
          %p273 = scmp.lt.s32.totalorder %s24, 0
          %s274 = scalar_select %p273, %s24, 0
          %s275 = sadd.s32 %s274, %s272
          %s276 = smul.addr %s275, 4
          %s277 = scalar_lea.vmem %s0, %s276
        $region24: #{tpu_custom_call.1} parent=19 // pred_fallthru
          _
        // Predicated region
        $region25: #{tpu_custom_call.1} parent=19 // pred_check
          %p278 = pneg %p83
        $region26: #{tpu_custom_call.1} parent=19 // pred_check_branch
          %280 = sbr.rel (%p278) target = $region28
        $region27: #{tpu_custom_call.1} parent=19 // pred_region
          %p281 = scmp.lt.s32.totalorder %s25, 1
          %s282 = scalar_select %p281, %s25, 1
          %s283 = smul.addr %s282, 8
          %s284 = smul.addr %s283, 4
          %s285 = scalar_lea.vmem %s1, %s284
        $region28: #{tpu_custom_call.1} parent=19 // pred_fallthru
          _
        // Predicated region
        $region29: #{tpu_custom_call.1} parent=19 // pred_check
          %p286 = pneg %p111
        $region30: #{tpu_custom_call.1} parent=19 // pred_check_branch
          %288 = sbr.rel (%p286) target = $region32
        $region31: #{tpu_custom_call.1} parent=19 // pred_region
          %p289 = scmp.lt.s32.totalorder %s23, 1
          %s290 = scalar_select %p289, %s23, 1
          %p291 = scmp.lt.s32.totalorder %s25, 1
          %s292 = scalar_select %p291, %s25, 1
          %s293 = smul.addr %s292, 2
          %s294 = smul.addr %s290, 4
          %s295 = sadd.s32 %s293, %s294
          %s296 = smul.addr %s295, 4
          %s297 = scalar_lea.vmem %s2, %s296
        $region32: #{tpu_custom_call.1} parent=19 // pred_fallthru
          _
        // Predicated region
        $region33: #{tpu_custom_call.1} parent=19 // pred_check
          %p298 = pneg %p139
        $region34: #{tpu_custom_call.1} parent=19 // pred_check_branch
          %300 = sbr.rel (%p298) target = $region36
        $region35: #{tpu_custom_call.1} parent=19 // pred_region
          %p301 = scmp.lt.s32.totalorder %s23, 1
          %s302 = scalar_select %p301, %s23, 1
          %p303 = scmp.lt.s32.totalorder %s25, 1
          %s304 = scalar_select %p303, %s25, 1
          %s305 = smul.addr %s302, 2
          %s306 = sadd.s32 %s304, %s305
          %s307 = smul.addr %s306, 4
          %s308 = scalar_lea.vmem %s3, %s307
        $region36: #{tpu_custom_call.1} parent=19 // pred_fallthru
          _
        // Predicated region
        $region37: #{tpu_custom_call.1} parent=19 // pred_check
          %p309 = pneg %p165
        $region38: #{tpu_custom_call.1} parent=19 // pred_check_branch
          %311 = sbr.rel (%p309) target = $region40
        $region39: #{tpu_custom_call.1} parent=19 // pred_region
          %p312 = scmp.lt.s32.totalorder %s25, 1
          %s313 = scalar_select %p312, %s25, 1
          %s314 = smul.addr %s313, 4
          %s315 = scalar_lea.vmem %s4, %s314
        $region40: #{tpu_custom_call.1} parent=19 // pred_fallthru
          _
        // Predicated region
        $region41: #{tpu_custom_call.1} parent=19 // pred_check
          %p316 = pneg %p191
        $region42: #{tpu_custom_call.1} parent=19 // pred_check_branch
          %318 = sbr.rel (%p316) target = $region44
        $region43: #{tpu_custom_call.1} parent=19 // pred_region
          %p319 = scmp.lt.s32.totalorder %s25, 1
          %s320 = scalar_select %p319, %s25, 1
          %s321 = smul.addr %s320, 2
          %s322 = smul.addr %s321, 4
          %s323 = scalar_lea.vmem %s5, %s322
        $region44: #{tpu_custom_call.1} parent=19 // pred_fallthru
          _
      $region20: #{tpu_custom_call.1} parent=5 // pred_fallthru
        _
      %p324 = scmp.le.s32.totalorder 1, %s16
      %p325 = scmp.lt.s32.totalorder %s16, 5
      %p326 = pnand %p324, %p325
      %p327 = pneg %p326
      // Predicated region
      $region45: #{tpu_custom_call.1} parent=5 // pred_check
        _
      $region46: #{tpu_custom_call.1} parent=5 // pred_check_branch
        %329 = sbr.rel (%p326) target = $region48
      $region47: #{tpu_custom_call.1} parent=5 // pred_region
        %s330 = ssub.s32 %s16, 1
        %p331 = scmp.lt.s32.totalorder %s26, 1
        %s332 = scalar_select %p331, %s26, 1
        %p333 = scmp.lt.s32.totalorder %s27, 0
        %s334 = scalar_select %p333, %s27, 0
        %s335 = sadd.s32 %s334, %s332
        %s336 = smul.addr %s335, 4
        %s337 = scalar_lea.vmem %s0, %s336
        %p338 = pneg %p63
        %p339 = pneg %p60
        %p340 = scmp.lt.s32.totalorder %s28, 1
        %s341 = scalar_select %p340, %s28, 1
        %s342 = smul.addr %s341, 8
        %s343 = smul.addr %s342, 4
        %s344 = scalar_lea.vmem %s1, %s343
        %p345 = pneg %p89
        %p346 = pneg %p86
        %p347 = scmp.lt.s32.totalorder %s26, 1
        %s348 = scalar_select %p347, %s26, 1
        %p349 = scmp.lt.s32.totalorder %s28, 1
        %s350 = scalar_select %p349, %s28, 1
        %s351 = smul.addr %s350, 2
        %s352 = smul.addr %s348, 4
        %s353 = sadd.s32 %s351, %s352
        %s354 = smul.addr %s353, 4
        %s355 = scalar_lea.vmem %s2, %s354
        %p356 = pneg %p117
        %p357 = pneg %p114
        %p358 = scmp.lt.s32.totalorder %s26, 1
        %s359 = scalar_select %p358, %s26, 1
        %p360 = scmp.lt.s32.totalorder %s28, 1
        %s361 = scalar_select %p360, %s28, 1
        %s362 = smul.addr %s359, 2
        %s363 = sadd.s32 %s361, %s362
        %s364 = smul.addr %s363, 4
        %s365 = scalar_lea.vmem %s3, %s364
        %p366 = pneg %p145
        %p367 = pneg %p142
        %p368 = scmp.lt.s32.totalorder %s28, 1
        %s369 = scalar_select %p368, %s28, 1
        %s370 = smul.addr %s369, 4
        %s371 = scalar_lea.vmem %s4, %s370
        %p372 = pneg %p171
        %p373 = pneg %p168
        %p374 = scmp.lt.s32.totalorder %s28, 1
        %s375 = scalar_select %p374, %s28, 1
        %s376 = smul.addr %s375, 2
        %s377 = smul.addr %s376, 4
        %s378 = scalar_lea.vmem %s5, %s377
        %p379 = pneg %p197
        %p380 = pneg %p194
        %p381 = pneg %p218
        %p382 = pneg %p215
        %p383 = pneg %p246
        %p384 = pneg %p243
        %s385 = sand.u32 %s233, 1
        %s386 = scalar_lea.sflag [#allocation3], %s385
        %s387 = sand.u32 %s233, 1
        %s388 = smul.addr %s387, 8
        %s389 = scalar_lea.vmem [#allocation2], %s388
        %p390 = scmp.lt.s32.totalorder %s26, 1
        %s391 = scalar_select %p390, %s26, 1
        %p392 = scmp.lt.s32.totalorder %s27, 0
        %s393 = scalar_select %p392, %s27, 0
        %s394 = sadd.s32 %s393, %s391
        %s395 = smul.addr %s394, 4
        %s396 = scalar_lea.vmem %s0, %s395
        %p397 = scmp.lt.s32.totalorder %s28, 1
        %s398 = scalar_select %p397, %s28, 1
        %s399 = smul.addr %s398, 8
        %s400 = smul.addr %s399, 4
        %s401 = scalar_lea.vmem %s1, %s400
        %p402 = scmp.lt.s32.totalorder %s26, 1
        %s403 = scalar_select %p402, %s26, 1
        %p404 = scmp.lt.s32.totalorder %s28, 1
        %s405 = scalar_select %p404, %s28, 1
        %s406 = smul.addr %s405, 2
        %s407 = smul.addr %s403, 4
        %s408 = sadd.s32 %s406, %s407
        %s409 = smul.addr %s408, 4
        %s410 = scalar_lea.vmem %s2, %s409
        %p411 = scmp.lt.s32.totalorder %s26, 1
        %s412 = scalar_select %p411, %s26, 1
        %p413 = scmp.lt.s32.totalorder %s28, 1
        %s414 = scalar_select %p413, %s28, 1
        %s415 = smul.addr %s412, 2
        %s416 = sadd.s32 %s414, %s415
        %s417 = smul.addr %s416, 4
        %s418 = scalar_lea.vmem %s3, %s417
        %p419 = scmp.lt.s32.totalorder %s28, 1
        %s420 = scalar_select %p419, %s28, 1
        %s421 = smul.addr %s420, 4
        %s422 = scalar_lea.vmem %s4, %s421
        %p423 = scmp.lt.s32.totalorder %s28, 1
        %s424 = scalar_select %p423, %s28, 1
        %s425 = smul.addr %s424, 2
        %s426 = smul.addr %s425, 4
        %s427 = scalar_lea.vmem %s5, %s426
        %v429 = vld [vmem:[%s396] sm:$0xf]
        %v430 = vld [vmem:[%s422] sm:$0x7]
        %v431 = vld [vmem:[%s401] sm:$0xf]
        %v432 = vld [vmem:[%s401 + $0x4] sm:$0xf]
        %v433 = vld [vmem:[%s401 + $0x8] sm:$0xf]
        %v434 = vld [vmem:[%s401 + $0xc] sm:$0xf]
        %v435 = vlaneseq
        %v436 = vshrl.u32 %v435, 7
        %v437 = vsub.s32 0, %v436
        %v438 = vrot.slane %v430, %v437
        %v443 = vunpack.c.l.b16 %v431
        %v444 = vunpack.c.l.b16 %v432
        %v445 = vunpack.c.l.b16 %v433
        %v446 = vunpack.c.l.b16 %v434
        %v447 = vpack.c.b16 %v444, %v443
        %v448 = vpack.c.b16 %v446, %v445
        %vm451 = vcmask 261120
        %v453 = vsel %vm451, %v429, 0
        %455 = vmatprep.subr.bf16.mxu0 0
        %456 = vmatpush1.bf16.msra.mxu0 %v447
        %457 = vmatprep.subr.bf16.mxu0 0
        %458 = vmatpush1.bf16.msra.mxu0 %v448
        %459 = vmatprep.subr.bf16.mxu0 0
        %460 = vmatpush1.bf16.msra.mxu0 0
        %461 = vmatprep.subr.bf16.mxu0 0
        %462 = vmatpush1.bf16.msra.mxu0 0
        %463 = vmatprep.subr.bf16.mxu0 0
        %464 = vmatpush1.bf16.msra.mxu0 0
        %465 = vmatprep.subr.bf16.mxu0 0
        %466 = vmatpush1.bf16.msra.mxu0 0
        %467 = vmatprep.subr.bf16.mxu0 0
        %468 = vmatpush1.bf16.msra.mxu0 0
        %469 = vmatprep.subr.bf16.mxu0 0
        %470 = vmatpush1.bf16.msra.mxu0 0
        %471 = vmatprep.subr.bf16.mxu0 0
        %472 = vmatpush1.bf16.msra.mxu0 0
        %473 = vmatprep.subr.bf16.mxu0 0
        %474 = vmatpush1.bf16.msra.mxu0 0
        %475 = vmatprep.subr.bf16.mxu0 0
        %476 = vmatpush1.bf16.msra.mxu0 0
        %477 = vmatprep.subr.bf16.mxu0 0
        %478 = vmatpush1.bf16.msra.mxu0 0
        %479 = vmatprep.subr.bf16.mxu0 0
        %480 = vmatpush1.bf16.msra.mxu0 0
        %481 = vmatprep.subr.bf16.mxu0 0
        %482 = vmatpush1.bf16.msra.mxu0 0
        %483 = vmatprep.subr.bf16.mxu0 0
        %484 = vmatpush1.bf16.msra.mxu0 0
        %485 = vmatprep.subr.bf16.mxu0 0
        %486 = vmatpush1.bf16.msra.mxu0 0
        %487 = vmatprep.mubr.bf16.mxu0 0
        %488 = vmatmul.mubr.bf16.gmra.mrb[0].mxu0 %v453
        %v489 = vpop.f32.mrb[0].mxu0
        %v490 = vadd.f32 %v438, %v489
        %v491 = vpop.f32.mrb[0].mxu0
        %v492 = vpop.f32.mrb[0].mxu0
        %v493 = vpop.f32.mrb[0].mxu0
        %494 = vdwg.mxu0
        %s495 = scalar_lea.vmem %s401, 16
        %v496 = vld [vmem:[%s495] sm:$0xf]
        %v497 = vld [vmem:[%s495 + $0x4] sm:$0xf]
        %v498 = vld [vmem:[%s495 + $0x8] sm:$0xf]
        %v499 = vld [vmem:[%s495 + $0xc] sm:$0xf]
        %v504 = vunpack.c.l.b16 %v496
        %v505 = vunpack.c.l.b16 %v497
        %v506 = vunpack.c.l.b16 %v498
        %v507 = vunpack.c.l.b16 %v499
        %v508 = vpack.c.b16 %v505, %v504
        %v509 = vpack.c.b16 %v507, %v506
        %513 = vrot.lane.b32.xlu0 %v438, 120
        %v514 = vpop.permute.xlu0 %513
        %516 = vmatprep.subr.bf16.mxu0 0
        %517 = vmatpush1.bf16.msra.mxu0 %v508
        %518 = vmatprep.subr.bf16.mxu0 0
        %519 = vmatpush1.bf16.msra.mxu0 %v509
        %520 = vmatprep.subr.bf16.mxu0 0
        %521 = vmatpush1.bf16.msra.mxu0 0
        %522 = vmatprep.subr.bf16.mxu0 0
        %523 = vmatpush1.bf16.msra.mxu0 0
        %524 = vmatprep.subr.bf16.mxu0 0
        %525 = vmatpush1.bf16.msra.mxu0 0
        %526 = vmatprep.subr.bf16.mxu0 0
        %527 = vmatpush1.bf16.msra.mxu0 0
        %528 = vmatprep.subr.bf16.mxu0 0
        %529 = vmatpush1.bf16.msra.mxu0 0
        %530 = vmatprep.subr.bf16.mxu0 0
        %531 = vmatpush1.bf16.msra.mxu0 0
        %532 = vmatprep.subr.bf16.mxu0 0
        %533 = vmatpush1.bf16.msra.mxu0 0
        %534 = vmatprep.subr.bf16.mxu0 0
        %535 = vmatpush1.bf16.msra.mxu0 0
        %536 = vmatprep.subr.bf16.mxu0 0
        %537 = vmatpush1.bf16.msra.mxu0 0
        %538 = vmatprep.subr.bf16.mxu0 0
        %539 = vmatpush1.bf16.msra.mxu0 0
        %540 = vmatprep.subr.bf16.mxu0 0
        %541 = vmatpush1.bf16.msra.mxu0 0
        %542 = vmatprep.subr.bf16.mxu0 0
        %543 = vmatpush1.bf16.msra.mxu0 0
        %544 = vmatprep.subr.bf16.mxu0 0
        %545 = vmatpush1.bf16.msra.mxu0 0
        %546 = vmatprep.subr.bf16.mxu0 0
        %547 = vmatpush1.bf16.msra.mxu0 0
        %548 = vmatprep.mubr.bf16.mxu0 0
        %549 = vmatmul.mubr.bf16.gmra.mrb[0].mxu0 %v453
        %v550 = vpop.f32.mrb[0].mxu0
        %v551 = vadd.f32 %v514, %v550
        %v552 = vpop.f32.mrb[0].mxu0
        %v553 = vpop.f32.mrb[0].mxu0
        %v554 = vpop.f32.mrb[0].mxu0
        %555 = vdwg.mxu0
        %v556 = vpack.c.bf16 %v490, %v490
        %v557 = vld [vmem:[%s410] sm:$0xf]
        %vm558 = vcmask 64512
        %v560 = vsel %vm558, %v556, 0
        %v563 = vsel %vm558, %v557, 0
        %565 = vmatprep.subr.bf16.mxu0 0
        %566 = vmatpush1.bf16.xpose.msra.mxu0 %v563
        %567 = vmatprep.subr.bf16.mxu0 0
        %568 = vmatpush1.bf16.xpose.msra.mxu0 0
        %569 = vmatprep.subr.bf16.mxu0 0
        %570 = vmatpush1.bf16.xpose.msra.mxu0 0
        %571 = vmatprep.subr.bf16.mxu0 0
        %572 = vmatpush1.bf16.xpose.msra.mxu0 0
        %573 = vmatprep.subr.bf16.mxu0 0
        %574 = vmatpush1.bf16.xpose.msra.mxu0 0
        %575 = vmatprep.subr.bf16.mxu0 0
        %576 = vmatpush1.bf16.xpose.msra.mxu0 0
        %577 = vmatprep.subr.bf16.mxu0 0
        %578 = vmatpush1.bf16.xpose.msra.mxu0 0
        %579 = vmatprep.subr.bf16.mxu0 0
        %580 = vmatpush1.bf16.xpose.msra.mxu0 0
        %581 = vmatprep.subr.bf16.mxu0 0
        %582 = vmatpush1.bf16.xpose.msra.mxu0 0
        %583 = vmatprep.subr.bf16.mxu0 0
        %584 = vmatpush1.bf16.xpose.msra.mxu0 0
        %585 = vmatprep.subr.bf16.mxu0 0
        %586 = vmatpush1.bf16.xpose.msra.mxu0 0
        %587 = vmatprep.subr.bf16.mxu0 0
        %588 = vmatpush1.bf16.xpose.msra.mxu0 0
        %589 = vmatprep.subr.bf16.mxu0 0
        %590 = vmatpush1.bf16.xpose.msra.mxu0 0
        %591 = vmatprep.subr.bf16.mxu0 0
        %592 = vmatpush1.bf16.xpose.msra.mxu0 0
        %593 = vmatprep.subr.bf16.mxu0 0
        %594 = vmatpush1.bf16.xpose.msra.mxu0 0
        %595 = vmatprep.subr.bf16.mxu0 0
        %596 = vmatpush1.bf16.xpose.msra.mxu0 0
        %597 = vmatprep.mubr.bf16.mxu0 0
        %598 = vmatmul.mubr.bf16.gmra.mrb[0].mxu0 %v560
        %v599 = vpop.f32.mrb[0].mxu0
        %v600 = vadd.f32 0.0, %v599
        %v601 = vpop.f32.mrb[0].mxu0
        %v602 = vpop.f32.mrb[0].mxu0
        %v603 = vpop.f32.mrb[0].mxu0
        %604 = vdwg.mxu0
        %v605 = vpack.c.bf16 %v551, %v551
        %s606 = scalar_lea.vmem %s410, 4
        %v607 = vld [vmem:[%s606] sm:$0xf]
        %v609 = vsel %vm558, %v605, 0
        %v612 = vsel %vm558, %v607, 0
        %614 = vmatprep.subr.bf16.mxu0 0
        %615 = vmatpush1.bf16.xpose.msra.mxu0 %v612
        %616 = vmatprep.subr.bf16.mxu0 0
        %617 = vmatpush1.bf16.xpose.msra.mxu0 0
        %618 = vmatprep.subr.bf16.mxu0 0
        %619 = vmatpush1.bf16.xpose.msra.mxu0 0
        %620 = vmatprep.subr.bf16.mxu0 0
        %621 = vmatpush1.bf16.xpose.msra.mxu0 0
        %622 = vmatprep.subr.bf16.mxu0 0
        %623 = vmatpush1.bf16.xpose.msra.mxu0 0
        %624 = vmatprep.subr.bf16.mxu0 0
        %625 = vmatpush1.bf16.xpose.msra.mxu0 0
        %626 = vmatprep.subr.bf16.mxu0 0
        %627 = vmatpush1.bf16.xpose.msra.mxu0 0
        %628 = vmatprep.subr.bf16.mxu0 0
        %629 = vmatpush1.bf16.xpose.msra.mxu0 0
        %630 = vmatprep.subr.bf16.mxu0 0
        %631 = vmatpush1.bf16.xpose.msra.mxu0 0
        %632 = vmatprep.subr.bf16.mxu0 0
        %633 = vmatpush1.bf16.xpose.msra.mxu0 0
        %634 = vmatprep.subr.bf16.mxu0 0
        %635 = vmatpush1.bf16.xpose.msra.mxu0 0
        %636 = vmatprep.subr.bf16.mxu0 0
        %637 = vmatpush1.bf16.xpose.msra.mxu0 0
        %638 = vmatprep.subr.bf16.mxu0 0
        %639 = vmatpush1.bf16.xpose.msra.mxu0 0
        %640 = vmatprep.subr.bf16.mxu0 0
        %641 = vmatpush1.bf16.xpose.msra.mxu0 0
        %642 = vmatprep.subr.bf16.mxu0 0
        %643 = vmatpush1.bf16.xpose.msra.mxu0 0
        %644 = vmatprep.subr.bf16.mxu0 0
        %645 = vmatpush1.bf16.xpose.msra.mxu0 0
        %646 = vmatprep.mubr.bf16.mxu0 0
        %647 = vmatmul.mubr.bf16.gmra.mrb[0].mxu0 %v609
        %v648 = vpop.f32.mrb[0].mxu0
        %v649 = vadd.f32 0.0, %v648
        %v650 = vpop.f32.mrb[0].mxu0
        %v651 = vpop.f32.mrb[0].mxu0
        %v652 = vpop.f32.mrb[0].mxu0
        %653 = vdwg.mxu0
        %v654 = vsel %vm558, %v600, -inf
        %655 = vmax.xlane.f32.xlu0 %v654
        %v656 = vpop.xlane.xlu0 %655
        %v657 = vsub.f32 %v600, %v656
        %v658 = vmul.f32 %v657, 1.442695
        %v659 = vpow.pop %v658
        %v660 = vsel %vm558, %v649, -inf
        %661 = vmax.xlane.f32.xlu0 %v660
        %v662 = vpop.xlane.xlu0 %661
        %v663 = vsub.f32 %v649, %v662
        %v664 = vmul.f32 %v663, 1.442695
        %v665 = vpow.pop %v664
        %v666 = vsel %vm558, %v659, 0.0
        %667 = vadd.xlane.f32.xlu0 %v666
        %v668 = vpop.xlane.xlu0 %667
        %v669 = vrcp.pop %v668
        %v670 = vsel %vm558, %v665, 0.0
        %671 = vadd.xlane.f32.xlu0 %v670
        %v672 = vpop.xlane.xlu0 %671
        %v673 = vrcp.pop %v672
        %v674 = vlaneseq
        %v675 = vshrl.u32 %v674, 7
        %v676 = vsub.s32 2, %v675
        %v677 = vrot.slane %v430, %v676
        %v678 = vmul.f32 %v677, %v673
        %v679 = vmul.f32 %v659, %v669
        %681 = vset.pattern.permute.xlu0 0
        %682 = vperm.xlu0 %681, %v678
        %v683 = vpop.permute.xlu0 %682
        %v685 = vmul.f32 %v665, %v683
        %v686 = vsub.f32 %v679, %v685
        %v687 = vpack.c.bf16 %v686, %v686
        %v688 = vld [vmem:[%s418] sm:$0xf]
        %v690 = vsel %vm558, %v687, 0
        %vm692 = vcmask 1043456
        %v694 = vsel %vm692, %v688, 0
        %696 = vmatprep.subr.bf16.mxu0 0
        %697 = vmatpush1.bf16.msra.mxu0 %v694
        %698 = vmatprep.subr.bf16.mxu0 0
        %699 = vmatpush1.bf16.msra.mxu0 0
        %700 = vmatprep.subr.bf16.mxu0 0
        %701 = vmatpush1.bf16.msra.mxu0 0
        %702 = vmatprep.subr.bf16.mxu0 0
        %703 = vmatpush1.bf16.msra.mxu0 0
        %704 = vmatprep.subr.bf16.mxu0 0
        %705 = vmatpush1.bf16.msra.mxu0 0
        %706 = vmatprep.subr.bf16.mxu0 0
        %707 = vmatpush1.bf16.msra.mxu0 0
        %708 = vmatprep.subr.bf16.mxu0 0
        %709 = vmatpush1.bf16.msra.mxu0 0
        %710 = vmatprep.subr.bf16.mxu0 0
        %711 = vmatpush1.bf16.msra.mxu0 0
        %712 = vmatprep.subr.bf16.mxu0 0
        %713 = vmatpush1.bf16.msra.mxu0 0
        %714 = vmatprep.subr.bf16.mxu0 0
        %715 = vmatpush1.bf16.msra.mxu0 0
        %716 = vmatprep.subr.bf16.mxu0 0
        %717 = vmatpush1.bf16.msra.mxu0 0
        %718 = vmatprep.subr.bf16.mxu0 0
        %719 = vmatpush1.bf16.msra.mxu0 0
        %720 = vmatprep.subr.bf16.mxu0 0
        %721 = vmatpush1.bf16.msra.mxu0 0
        %722 = vmatprep.subr.bf16.mxu0 0
        %723 = vmatpush1.bf16.msra.mxu0 0
        %724 = vmatprep.subr.bf16.mxu0 0
        %725 = vmatpush1.bf16.msra.mxu0 0
        %726 = vmatprep.subr.bf16.mxu0 0
        %727 = vmatpush1.bf16.msra.mxu0 0
        %728 = vmatprep.mubr.bf16.mxu0 0
        %729 = vmatmul.mubr.bf16.gmra.mrb[0].mxu0 %v690
        %v730 = vpop.f32.mrb[0].mxu0
        %v731 = vadd.f32 0.0, %v730
        %v732 = vpop.f32.mrb[0].mxu0
        %v733 = vpop.f32.mrb[0].mxu0
        %v734 = vpop.f32.mrb[0].mxu0
        %735 = vdwg.mxu0
        %v736 = vmul.f32 %v731, %v731
        %vm737 = vcmask 130048
        %v738 = vsel %vm737, %v736, 0.0
        %739 = vadd.xlane.f32.xlu0 %v738
        %v740 = vpop.xlane.xlu0 %739
        %v741 = vrcp.pop 16.0
        %v742 = vmul.f32 %v740, %v741
        %v743 = vadd.f32 %v742, 1.1920929e-07
        %v744 = vrsqrt.pop %v743
        %v745 = vmul.f32 %v731, %v744
        %v746 = vlaneseq
        %v747 = vshrl.u32 %v746, 7
        %v748 = vsub.s32 1, %v747
        %v749 = vrot.slane %v430, %v748
        %v750 = vmul.f32 %v745, %v749
        %v751 = vmul.f32 %v750, 0.2
        %v752 = vpack.c.bf16 %v751, %v751
        %v753 = vld [vmem:[%s427] sm:$0xf]
        %v754 = vld [vmem:[%s427 + $0x4] sm:$0xf]
        %v757 = vunpack.c.l.b16 %v753
        %v758 = vunpack.c.l.b16 %v754
        %v759 = vpack.c.b16 %v758, %v757
        %v762 = vsel %vm737, %v752, 0
        %764 = vmatprep.subr.bf16.mxu0 0
        %765 = vmatpush1.bf16.msra.mxu0 %v759
        %766 = vmatprep.subr.bf16.mxu0 0
        %767 = vmatpush1.bf16.msra.mxu0 0
        %768 = vmatprep.subr.bf16.mxu0 0
        %769 = vmatpush1.bf16.msra.mxu0 0
        %770 = vmatprep.subr.bf16.mxu0 0
        %771 = vmatpush1.bf16.msra.mxu0 0
        %772 = vmatprep.subr.bf16.mxu0 0
        %773 = vmatpush1.bf16.msra.mxu0 0
        %774 = vmatprep.subr.bf16.mxu0 0
        %775 = vmatpush1.bf16.msra.mxu0 0
        %776 = vmatprep.subr.bf16.mxu0 0
        %777 = vmatpush1.bf16.msra.mxu0 0
        %778 = vmatprep.subr.bf16.mxu0 0
        %779 = vmatpush1.bf16.msra.mxu0 0
        %780 = vmatprep.subr.bf16.mxu0 0
        %781 = vmatpush1.bf16.msra.mxu0 0
        %782 = vmatprep.subr.bf16.mxu0 0
        %783 = vmatpush1.bf16.msra.mxu0 0
        %784 = vmatprep.subr.bf16.mxu0 0
        %785 = vmatpush1.bf16.msra.mxu0 0
        %786 = vmatprep.subr.bf16.mxu0 0
        %787 = vmatpush1.bf16.msra.mxu0 0
        %788 = vmatprep.subr.bf16.mxu0 0
        %789 = vmatpush1.bf16.msra.mxu0 0
        %790 = vmatprep.subr.bf16.mxu0 0
        %791 = vmatpush1.bf16.msra.mxu0 0
        %792 = vmatprep.subr.bf16.mxu0 0
        %793 = vmatpush1.bf16.msra.mxu0 0
        %794 = vmatprep.subr.bf16.mxu0 0
        %795 = vmatpush1.bf16.msra.mxu0 0
        %796 = vmatprep.mubr.bf16.mxu0 0
        %797 = vmatmul.mubr.bf16.gmra.mrb[0].mxu0 %v762
        %v798 = vpop.f32.mrb[0].mxu0
        %v799 = vadd.f32 0.0, %v798
        %v800 = vpop.f32.mrb[0].mxu0
        %v801 = vpop.f32.mrb[0].mxu0
        %v802 = vpop.f32.mrb[0].mxu0
        %803 = vdwg.mxu0
        %p804 = scmp.eq.s32.totalorder %s28, 0
        // Predicated region
        $region49: #{tpu_custom_call.1} parent=47 // pred_check
          %p805 = pneg %p804
        $region50: #{tpu_custom_call.1} parent=47 // pred_check_branch
          %807 = sbr.rel (%p805) target = $region52
        $region51: #{tpu_custom_call.1} parent=47 // pred_region
          %v808 = vld [vmem:[%s6] sm:$0x1]
          %v810 = vlaneseq
          %v811 = vshrl.u32 %v810, 7
          %v812 = vsub.s32 0, %v811
          %v813 = vrot.slane %v808, %v812
          %v815 = vadd.f32 %v799, %v813
          %816 = vst.msk [vmem:[%s389] sm:$0xff] %vm451, %v815
        $region52: #{tpu_custom_call.1} parent=47 // pred_fallthru
          _
        %p817 = scmp.gt.s32.totalorder %s28, 0
        // Predicated region
        $region53: #{tpu_custom_call.1} parent=47 // pred_check
          %p818 = pneg %p817
        $region54: #{tpu_custom_call.1} parent=47 // pred_check_branch
          %820 = sbr.rel (%p818) target = $region56
        $region55: #{tpu_custom_call.1} parent=47 // pred_region
          %v821 = vld [vmem:[%s389] sm:$0xff]
          %v822 = vadd.f32 %v821, %v799
          %823 = vst.msk [vmem:[%s389] sm:$0xff] %vm451, %v822
        $region56: #{tpu_custom_call.1} parent=47 // pred_fallthru
          _
        %s824 = sand.u32 %s233, 1
        %s825 = scalar_lea.sflag [#allocation3], %s824
        %s826 = sand.u32 %s233, 1
        %s827 = smul.addr %s826, 8
        %s828 = scalar_lea.vmem [#allocation2], %s827
        // Predicated region
        $region57: #{tpu_custom_call.1} parent=47 // pred_check
          %p829 = pneg %p243
        $region58: #{tpu_custom_call.1} parent=47 // pred_check_branch
          %831 = sbr.rel (%p829) target = $region60
        $region59: #{tpu_custom_call.1} parent=47 // pred_region
          %s833 = ssub.s32 128, 128
          %834 = vsyncadd %s825, %s833
          %s835 = sadd.s32 %s27, %s26
          %s836 = smul.addr %s835, 128
          %s837 = scalar_lea.hbm %s7, %s836
          %s839 = sshll.u32 %s828, 4
          %s840 = int_to_ptr.vmem [resolvable:$true] %s839
          %842 = dma.vmem_to_hbm [thread:$0]  %s840, 128, %s837, %s825
        $region60: #{tpu_custom_call.1} parent=47 // pred_fallthru
          _
      $region48: #{tpu_custom_call.1} parent=5 // pred_fallthru
        _
      %p843 = scmp.le.s32.totalorder 2, %s16
      // Predicated region
      $region61: #{tpu_custom_call.1} parent=5 // pred_check
        %p844 = pneg %p843
      $region62: #{tpu_custom_call.1} parent=5 // pred_check_branch
        %846 = sbr.rel (%p844) target = $region64
      $region63: #{tpu_custom_call.1} parent=5 // pred_region
        %s847 = ssub.s32 %s16, 2
        // Predicated region
        $region65: #{tpu_custom_call.1} parent=63 // pred_check
          %p848 = pneg %p249
        $region66: #{tpu_custom_call.1} parent=63 // pred_check_branch
          %850 = sbr.rel (%p848) target = $region68
        $region67: #{tpu_custom_call.1} parent=63 // pred_region
          %s851 = sand.u32 %s234, 1
          %s852 = scalar_lea.sflag [#allocation3], %s851
          %s853 = sand.u32 %s234, 1
          %s854 = smul.addr %s853, 8
          %s855 = scalar_lea.vmem [#allocation2], %s854
          %856 = dma.done %s852, 128
        $region68: #{tpu_custom_call.1} parent=63 // pred_fallthru
          _
      $region64: #{tpu_custom_call.1} parent=5 // pred_fallthru
        _
    $region6: #{tpu_custom_call.1} parent=1 // loop_footer
      %s20 = sadd.s32 1, %s16
    $region7: #{tpu_custom_call.1} parent=1 // loop_footer_branch
      %15 = sbr.rel target = $region3
    $region8: #{tpu_custom_call.1} parent=1 // loop_exit
      _
    %857 = vsyncpa [#allocation3], 1
    %s858 = scalar_lea.sflag [#allocation3], 1
    %859 = vsyncpa %s858, 1

</llo_original>
